<compile_context>
chip_gen: v5e
topology: v5e:2x2
jax: 0.10.0
libtpu: 0.0.40
codegen_flags: <defaults>
</compile_context>

<pallas_src>
import jax
import jax.numpy as jnp
from jax.experimental import pallas as pl
from jax.experimental.pallas import tpu as pltpu

# ----------------------------- hyper-parameters (small) -----------------------------
B = 4                                   # example batch
N_CRY, F_CRY, E_CRY = 16, 12, 32        # crystal graph: nodes, node-feat dim, edges
N_KSP, F_KSP = 12, 10                   # k-space graph: nodes, node-feat dim
ASPH_DIM = 24
SCALAR_DIM = 8
DECOMP_DIM, GAP_DIM, DOS_DIM, FERMI_DIM = 16, 1, 8, 8
PHYS_DIM = DECOMP_DIM + GAP_DIM + DOS_DIM + FERMI_DIM       # 33
K_EIGS, SPECTRAL_HID = 8, 16
CRYSTAL_OUT = 32                        # crystal_encoder_output_dim
LATENT_GNN = 32                         # latent_dim_gnn
LATENT_ASPH = 32                        # latent_dim_asph
LATENT_FFNN = 32                        # latent_dim_other_ffnn (scalar + physics)
TOPO_ML_DIM = 32                        # topological_ml_dim
TOPO_ML_KPTS = 32                       # topological_ml_k_points (hamiltonian 32 x 8)
TOPO_ML_HID = 64                        # stand-in for the [64,128,256] conv stack
NUM_TOPO, NUM_MAG, NUM_COMB = 3, 3, 6
FUSION_HIDDEN = (64, 32)                # fusion_hidden_dims
BN_EPS = 1e-5

# derived packing constants ------------------------------------------------------------
D_IN = F_CRY + F_KSP + ASPH_DIM + SCALAR_DIM + PHYS_DIM + K_EIGS          # 95
D_IN_PAD = 128
ENC_OUT = CRYSTAL_OUT + LATENT_GNN + LATENT_ASPH + LATENT_FFNN + LATENT_FFNN + SPECTRAL_HID  # 176
ENC_PAD = 256                           # enc lanes padded to 2x128 (zero-weight cols)
RAW_FUSE_DIM = CRYSTAL_OUT + LATENT_GNN + LATENT_ASPH + LATENT_FFNN + LATENT_FFNN   # 160
HAM_DIM = TOPO_ML_KPTS * 8              # 256
FUSED_IN_DIM = ENC_OUT + TOPO_ML_DIM    # 208

SLAB_W = 512                            # weight/bias slab lane width
OUT_W = 384                             # output slab: [heads | crystal-topo | topo-ML]
# weight slab row offsets (all multiples of 16 -> clean bf16 sublane tiles)
R0, R1, R2, R3, R4, R5, R6 = 0, 128, 384, 640, 704, 832, 896
W_ROWS = 928
# merged enc-consumer column groups (128-aligned)
C_HAM, C_F1A, C_CT = 0, 256, 384

assert CRYSTAL_OUT == TOPO_ML_DIM       # shared feature-lane ReLU mask


# --------------------------------- fused Pallas kernel ------------------------------
def _fused_kernel(x_ref, w_ref, b_ref, out_ref):
    f32, bf16 = jnp.float32, jnp.bfloat16

    def dot(a, w):  # bf16 operands on the MXU, f32 accumulation
        return jnp.dot(a.astype(bf16), w, preferred_element_type=f32)

    # feature-lane mask (lanes < 32) carried in the bias slab -> no runtime iota
    feat_mask = b_ref[7:8, 0:128] > 0.5                                   # [1, 128]

    x = x_ref[...]                                                        # [TM, 128] f32

    # (1) all six modality encoders: one block-diagonal projection + ReLU
    enc = jnp.maximum(
        dot(x, w_ref[R0:R0 + D_IN_PAD, 0:ENC_PAD]) + b_ref[0:1, 0:ENC_PAD], 0.0)  # [TM, 256]

    # (2) merged enc-consumer matmul:
    #     cols [0:256)   hamiltonian projection (raw_fuse rows only)
    #     cols [256:320) fusion layer-1 enc part (BatchNorm folded, bias included)
    #     cols [384:512) crystal topo-feature head (32) | aux topo logits (3) | 0
    z1 = dot(enc, w_ref[R1:R1 + ENC_PAD, 0:SLAB_W]) + b_ref[1:2, 0:SLAB_W]         # [TM, 512]
    hams = z1[:, C_HAM:C_HAM + HAM_DIM]                                            # [TM, 256]
    h1a = z1[:, C_F1A:C_F1A + FUSION_HIDDEN[0]]                                    # [TM, 64]
    ct = z1[:, C_CT:C_CT + 128]                                                    # [TM, 128]
    ct = jnp.where(feat_mask, jnp.maximum(ct, 0.0), ct)         # ReLU features, raw logits

    # (3) topological-ML branch: hamiltonian -> hidden -> (features | logits)
    th = jnp.maximum(
        dot(hams, w_ref[R2:R2 + HAM_DIM, 0:TOPO_ML_HID]) + b_ref[2:3, 0:TOPO_ML_HID], 0.0)
    tml = dot(th, w_ref[R3:R3 + TOPO_ML_HID, 0:128]) + b_ref[3:4, 0:128]           # [TM, 128]
    tml = jnp.where(feat_mask, jnp.maximum(tml, 0.0), tml)

    # (4) fusion MLP (BatchNorm folded); layer-1 = enc partial + topo-ML partial
    h1 = jnp.maximum(h1a + dot(tml, w_ref[R4:R4 + 128, 0:FUSION_HIDDEN[0]]), 0.0)  # [TM, 64]
    h2 = jnp.maximum(
        dot(h1, w_ref[R5:R5 + FUSION_HIDDEN[0], 0:FUSION_HIDDEN[1]])
        + b_ref[5:6, 0:FUSION_HIDDEN[1]], 0.0)                                     # [TM, 32]

    # (5) merged combined + magnetism classification heads
    heads = dot(h2, w_ref[R6:R6 + FUSION_HIDDEN[1], 0:128]) + b_ref[6:7, 0:128]    # [TM, 128]

    # single lane-dense output slab, three 128-aligned unmasked stores
    out_ref[:, 0:128] = heads
    out_ref[:, 128:256] = ct
    out_ref[:, 256:384] = tml


# -------------------------------- parameter init ------------------------------------
def _linear_params(key, fan_in, fan_out):
    """PyTorch-style uniform(-1/sqrt(fan_in), 1/sqrt(fan_in)); bias kept 2D [1, out]."""
    kw, kb = jax.random.split(key)
    bound = 1.0 / float(fan_in) ** 0.5
    w = jax.random.uniform(kw, (fan_in, fan_out), jnp.float32, -bound, bound)
    b = jax.random.uniform(kb, (1, fan_out), jnp.float32, -bound, bound)
    return w, b


def init_params(key):
    keys = jax.random.split(key, 16)
    # ---- raw sub-module parameters (stand-in encoders + real fusion/heads) ----------
    cry_w, cry_b = _linear_params(keys[0], F_CRY, CRYSTAL_OUT)
    cth_w, cth_b = _linear_params(keys[1], CRYSTAL_OUT, NUM_TOPO)
    ctf_w, ctf_b = _linear_params(keys[2], CRYSTAL_OUT, CRYSTAL_OUT)
    ksp_w, ksp_b = _linear_params(keys[3], F_KSP, LATENT_GNN)
    asp_w, asp_b = _linear_params(keys[4], ASPH_DIM, LATENT_ASPH)
    scl_w, scl_b = _linear_params(keys[5], SCALAR_DIM, LATENT_FFNN)
    phy_w, phy_b = _linear_params(keys[6], PHYS_DIM, LATENT_FFNN)
    spc_w, spc_b = _linear_params(keys[7], K_EIGS, SPECTRAL_HID)
    ham_w, ham_b = _linear_params(keys[8], RAW_FUSE_DIM, HAM_DIM)
    th_w, th_b = _linear_params(keys[9], HAM_DIM, TOPO_ML_HID)
    tmf_w, tmf_b = _linear_params(keys[10], TOPO_ML_HID, TOPO_ML_DIM)
    tmlg_w, tmlg_b = _linear_params(keys[11], TOPO_ML_HID, NUM_TOPO)
    f1_w, f1_b = _linear_params(keys[12], FUSED_IN_DIM, FUSION_HIDDEN[0])
    f2_w, f2_b = _linear_params(keys[13], FUSION_HIDDEN[0], FUSION_HIDDEN[1])
    hc_w, hc_b = _linear_params(keys[14], FUSION_HIDDEN[1], NUM_COMB)
    hm_w, hm_b = _linear_params(keys[15], FUSION_HIDDEN[1], NUM_MAG)

    # fresh eval-mode BatchNorm1d stats (gamma=1, beta=0, running_mean=0, running_var=1)
    def bn(h):
        return (jnp.ones((1, h), jnp.float32), jnp.zeros((1, h), jnp.float32),
                jnp.zeros((1, h), jnp.float32), jnp.ones((1, h), jnp.float32))
    g1, be1, m1, v1 = bn(FUSION_HIDDEN[0])
    g2, be2, m2, v2 = bn(FUSION_HIDDEN[1])
    s1 = g1 * jax.lax.rsqrt(v1 + BN_EPS)
    s2 = g2 * jax.lax.rsqrt(v2 + BN_EPS)

    wslab = jnp.zeros((W_ROWS, SLAB_W), jnp.float32)
    bslab = jnp.zeros((8, SLAB_W), jnp.float32)

    # --- W0 (rows R0): block-diagonal encoder weight over the lane-dense input -------
    r, c = R0, 0
    for w, b in ((cry_w, cry_b), (ksp_w, ksp_b), (asp_w, asp_b),
                 (scl_w, scl_b), (phy_w, phy_b), (spc_w, spc_b)):
        fi, fo = w.shape
        wslab = wslab.at[r:r + fi, c:c + fo].set(w)
        bslab = bslab.at[0:1, c:c + fo].set(b)
        r += fi
        c += fo

    # --- W1 (rows R1): merged enc-consumer RHS -----------------------------------------
    # hamiltonian projection (raw_fuse = first 160 enc lanes; spectral rows stay zero)
    wslab = wslab.at[R1:R1 + RAW_FUSE_DIM, C_HAM:C_HAM + HAM_DIM].set(ham_w)
    bslab = bslab.at[1:2, C_HAM:C_HAM + HAM_DIM].set(ham_b)
    # fusion layer-1 enc part (BatchNorm folded); bias folded in here too
    wslab = wslab.at[R1:R1 + ENC_OUT, C_F1A:C_F1A + FUSION_HIDDEN[0]].set(f1_w[:ENC_OUT] * s1)
    bslab = bslab.at[1:2, C_F1A:C_F1A + FUSION_HIDDEN[0]].set((f1_b - m1) * s1 + be1)
    # crystal topo-feature head + aux topo logits (only crystal rows are nonzero)
    wslab = wslab.at[R1:R1 + CRYSTAL_OUT, C_CT:C_CT + CRYSTAL_OUT].set(ctf_w)
    wslab = wslab.at[R1:R1 + CRYSTAL_OUT,
                     C_CT + CRYSTAL_OUT:C_CT + CRYSTAL_OUT + NUM_TOPO].set(cth_w)
    bslab = bslab.at[1:2, C_CT:C_CT + CRYSTAL_OUT].set(ctf_b)
    bslab = bslab.at[1:2, C_CT + CRYSTAL_OUT:C_CT + CRYSTAL_OUT + NUM_TOPO].set(cth_b)

    # --- W2 (rows R2): topological-ML hidden layer --------------------------------------
    wslab = wslab.at[R2:R2 + HAM_DIM, 0:TOPO_ML_HID].set(th_w)
    bslab = bslab.at[2:3, 0:TOPO_ML_HID].set(th_b)

    # --- W3 (rows R3): merged topo-ML feature + logit head ------------------------------
    wslab = wslab.at[R3:R3 + TOPO_ML_HID, 0:TOPO_ML_DIM].set(tmf_w)
    wslab = wslab.at[R3:R3 + TOPO_ML_HID, TOPO_ML_DIM:TOPO_ML_DIM + NUM_TOPO].set(tmlg_w)
    bslab = bslab.at[3:4, 0:TOPO_ML_DIM].set(tmf_b)
    bslab = bslab.at[3:4, TOPO_ML_DIM:TOPO_ML_DIM + NUM_TOPO].set(tmlg_b)

    # --- W4 (rows R4): fusion layer-1 topo-ML part (BN folded; logit/pad rows zero) -----
    wslab = wslab.at[R4:R4 + TOPO_ML_DIM, 0:FUSION_HIDDEN[0]].set(f1_w[ENC_OUT:] * s1)

    # --- W5 (rows R5): fusion layer 2 (BN folded) ---------------------------------------
    wslab = wslab.at[R5:R5 + FUSION_HIDDEN[0], 0:FUSION_HIDDEN[1]].set(f2_w * s2)
    bslab = bslab.at[5:6, 0:FUSION_HIDDEN[1]].set((f2_b - m2) * s2 + be2)

    # --- W6 (rows R6): merged combined + magnetism heads --------------------------------
    wslab = wslab.at[R6:R6 + FUSION_HIDDEN[1], 0:NUM_COMB].set(hc_w)
    wslab = wslab.at[R6:R6 + FUSION_HIDDEN[1], NUM_COMB:NUM_COMB + NUM_MAG].set(hm_w)
    bslab = bslab.at[6:7, 0:NUM_COMB].set(hc_b)
    bslab = bslab.at[6:7, NUM_COMB:NUM_COMB + NUM_MAG].set(hm_b)

    # --- bias-slab row 7: feature-lane ReLU mask (lanes < 32) ---------------------------
    bslab = bslab.at[7, 0:CRYSTAL_OUT].set(1.0)

    return wslab.astype(jnp.bfloat16), bslab


# ------------------------------------ forward ---------------------------------------
def _round_up(x, m):
    return (x + m - 1) // m * m


@jax.jit
def forward(wslab, bslab, inputs):
    # plain-JAX glue: graph pooling, spectral proxy, lane-dense packing (fused by XLA)
    cry_pooled = jnp.mean(inputs["crystal_graph"]["x"], axis=1)             # [B, F_CRY]
    ksp_pooled = jnp.mean(inputs["kspace_graph"]["x"], axis=1)              # [B, F_KSP]
    phys = inputs["kspace_physics_features"]

    # TODO(synk): GraphSpectralEncoder needs a Laplacian eigendecomposition (no clean
    # Pallas equivalent); we use the sorted node-degree spectrum as the K_EIGS proxy.
    ei = inputs["crystal_graph"]["edge_index"]                              # [B, 2, E]
    deg = jax.vmap(
        lambda e: jax.ops.segment_sum(jnp.ones((e.shape[1],), jnp.float32),
                                      e[0], num_segments=N_CRY))(ei)        # [B, N_CRY]
    spec_in = jnp.sort(deg, axis=-1)[:, ::-1][:, :K_EIGS] / float(N_CRY)

    dense = jnp.concatenate(
        [cry_pooled, ksp_pooled, inputs["asph_features"], inputs["scalar_features"],
         phys["decomposition_features"], phys["gap_features"], phys["dos_features"],
         phys["fermi_features"], spec_in], axis=-1)                          # [B, 95]

    b = dense.shape[0]
    tm = min(128, _round_up(b, 8))        # rows per grid step (grows with batch to MXU height)
    bp = _round_up(b, tm)
    xin = jnp.zeros((bp, D_IN_PAD), jnp.float32).at[:b, :D_IN].set(dense)

    out = pl.pallas_call(
        _fused_kernel,
        out_shape=jax.ShapeDtypeStruct((bp, OUT_W), jnp.float32),
        grid=(bp // tm,),
        in_specs=[
            pl.BlockSpec((tm, D_IN_PAD), lambda i: (i, 0)),       # per-step activation tile
            pl.BlockSpec((W_ROWS, SLAB_W), lambda i: (0, 0)),     # weights: resident across steps
            pl.BlockSpec((8, SLAB_W), lambda i: (0, 0)),          # biases/mask: resident
        ],
        out_specs=pl.BlockSpec((tm, OUT_W), lambda i: (i, 0)),
        compiler_params=pltpu.CompilerParams(
            dimension_semantics=("parallel",)),                   # shard batch across TCs (v7x)
    )(xin, wslab, bslab)

    return {
        "combined_logits": out[:b, 0:NUM_COMB],
        "magnetism_logits_aux": out[:b, NUM_COMB:NUM_COMB + NUM_MAG],
        "extracted_topo_features": out[:b, 128:128 + CRYSTAL_OUT],
        "topology_logits_auxiliary": out[:b, 128 + CRYSTAL_OUT:128 + CRYSTAL_OUT + NUM_TOPO],
        "topological_ml_features": out[:b, 256:256 + TOPO_ML_DIM],
        "topology_logits_primary": out[:b, 256 + TOPO_ML_DIM:256 + TOPO_ML_DIM + NUM_TOPO],
    }


# ------------------------------------- main ------------------------------------------
if __name__ == "__main__":
    key = jax.random.PRNGKey(0)
    (k_cry, k_ei, k_ksp, k_asph, k_scal, k_dec, k_gap, k_dos,
     k_fer, k_par) = jax.random.split(key, 10)

    inputs = {
        "crystal_graph": {
            "x": jax.random.normal(k_cry, (B, N_CRY, F_CRY), jnp.float32),
            "edge_index": jax.random.randint(k_ei, (B, 2, E_CRY), 0, N_CRY, jnp.int32),
        },
        "kspace_graph": {
            "x": jax.random.normal(k_ksp, (B, N_KSP, F_KSP), jnp.float32),
        },
        "asph_features": jax.random.normal(k_asph, (B, ASPH_DIM), jnp.float32),
        "scalar_features": jax.random.normal(k_scal, (B, SCALAR_DIM), jnp.float32),
        "kspace_physics_features": {
            "decomposition_features": jax.random.normal(k_dec, (B, DECOMP_DIM), jnp.float32),
            "gap_features": jax.random.normal(k_gap, (B, GAP_DIM), jnp.float32),
            "dos_features": jax.random.normal(k_dos, (B, DOS_DIM), jnp.float32),
            "fermi_features": jax.random.normal(k_fer, (B, FERMI_DIM), jnp.float32),
        },
    }

    wslab, bslab = init_params(k_par)
    out = forward(wslab, bslab, inputs)
    jax.block_until_ready(out)

    assert out["combined_logits"].shape == (B, NUM_COMB)
    assert out["topology_logits_primary"].shape == (B, NUM_TOPO)
    assert out["topology_logits_auxiliary"].shape == (B, NUM_TOPO)
    assert out["magnetism_logits_aux"].shape == (B, NUM_MAG)
    assert out["extracted_topo_features"].shape == (B, CRYSTAL_OUT)
    assert out["topological_ml_features"].shape == (B, TOPO_ML_DIM)
    print("KERNEL_OK")
</pallas_src>

<mosaic_0001>
module attributes {stable_mosaic.version = 11 : i64} {
  func.func @_fused_kernel(%arg0: i32, %arg1: memref<8x128xf32, #tpu.memory_space<vmem>>, %arg2: memref<928x512xbf16, #tpu.memory_space<vmem>>, %arg3: memref<8x512xf32, #tpu.memory_space<vmem>>, %arg4: memref<8x384xf32, #tpu.memory_space<vmem>>) attributes {dimension_semantics = [#tpu.dimension_semantics<parallel>], iteration_bounds = array<i64: 1>, scalar_prefetch = 0 : i64, scratch_operands = 0 : i64, tpu.core_type = #tpu.core_type<tc>, window_params = [{transform_indices = @transform_0, window_bounds = array<i64: 8, 128>}, {pipeline_mode = #tpu.pipeline_mode<synchronous>, transform_indices = @transform_1, window_bounds = array<i64: 928, 512>}, {pipeline_mode = #tpu.pipeline_mode<synchronous>, transform_indices = @transform_2, window_bounds = array<i64: 8, 512>}, {transform_indices = @transform_3, window_bounds = array<i64: 8, 384>}]} {
    %c7 = arith.constant 7 : index
    %c0 = arith.constant 0 : index
    %0 = vector.load %arg3[%c7, %c0] : memref<8x512xf32, #tpu.memory_space<vmem>>, vector<1x128xf32>
    %cst = arith.constant 5.000000e-01 : f32
    %1 = vector.broadcast %cst : f32 to vector<1x128xf32>
    %2 = arith.cmpf ogt, %0, %1 : vector<1x128xf32>
    %c0_0 = arith.constant 0 : index
    %c0_1 = arith.constant 0 : index
    %3 = vector.load %arg1[%c0_0, %c0_1] : memref<8x128xf32, #tpu.memory_space<vmem>>, vector<8x128xf32>
    %c0_2 = arith.constant 0 : index
    %c0_3 = arith.constant 0 : index
    %4 = vector.load %arg2[%c0_2, %c0_3] : memref<928x512xbf16, #tpu.memory_space<vmem>>, vector<128x256xbf16>
    %5 = arith.truncf %3 : vector<8x128xf32> to vector<8x128xbf16>
    %cst_4 = arith.constant dense<0.000000e+00> : vector<8x256xf32>
    %6 = tpu.matmul %5, %4, %cst_4 {dimension_numbers = #tpu.dot_dimension_numbers<[1], [0], [0], [1], [0, 0, 1, 1], [], []>} : vector<8x128xbf16>, vector<128x256xbf16>, vector<8x256xf32> -> vector<8x256xf32>
    %c0_5 = arith.constant 0 : index
    %c0_6 = arith.constant 0 : index
    %7 = vector.load %arg3[%c0_5, %c0_6] : memref<8x512xf32, #tpu.memory_space<vmem>>, vector<1x256xf32>
    %8 = vector.broadcast %7 : vector<1x256xf32> to vector<8x256xf32>
    %9 = arith.addf %6, %8 : vector<8x256xf32>
    %cst_7 = arith.constant 0.000000e+00 : f32
    %10 = vector.broadcast %cst_7 : f32 to vector<8x256xf32>
    %11 = arith.maximumf %9, %10 : vector<8x256xf32>
    %c128 = arith.constant 128 : index
    %c0_8 = arith.constant 0 : index
    %12 = vector.load %arg2[%c128, %c0_8] : memref<928x512xbf16, #tpu.memory_space<vmem>>, vector<256x512xbf16>
    %13 = arith.truncf %11 : vector<8x256xf32> to vector<8x256xbf16>
    %cst_9 = arith.constant dense<0.000000e+00> : vector<8x512xf32>
    %14 = tpu.matmul %13, %12, %cst_9 {dimension_numbers = #tpu.dot_dimension_numbers<[1], [0], [0], [1], [0, 0, 1, 1], [], []>} : vector<8x256xbf16>, vector<256x512xbf16>, vector<8x512xf32> -> vector<8x512xf32>
    %c1 = arith.constant 1 : index
    %c0_10 = arith.constant 0 : index
    %15 = vector.load %arg3[%c1, %c0_10] : memref<8x512xf32, #tpu.memory_space<vmem>>, vector<1x512xf32>
    %16 = vector.broadcast %15 : vector<1x512xf32> to vector<8x512xf32>
    %17 = arith.addf %14, %16 : vector<8x512xf32>
    %18 = vector.extract_strided_slice %17 {offsets = [0, 0], sizes = [8, 256], strides = [1, 1]} : vector<8x512xf32> to vector<8x256xf32>
    %19 = vector.extract_strided_slice %17 {offsets = [0, 256], sizes = [8, 64], strides = [1, 1]} : vector<8x512xf32> to vector<8x64xf32>
    %20 = vector.extract_strided_slice %17 {offsets = [0, 384], sizes = [8, 128], strides = [1, 1]} : vector<8x512xf32> to vector<8x128xf32>
    %cst_11 = arith.constant 0.000000e+00 : f32
    %21 = vector.broadcast %cst_11 : f32 to vector<8x128xf32>
    %22 = arith.maximumf %20, %21 : vector<8x128xf32>
    %23 = vector.shape_cast %2 : vector<1x128xi1> to vector<1x128xi1>
    %24 = vector.broadcast %23 : vector<1x128xi1> to vector<8x128xi1>
    %25 = arith.select %24, %22, %20 : vector<8x128xi1>, vector<8x128xf32>
    %c384 = arith.constant 384 : index
    %c0_12 = arith.constant 0 : index
    %26 = vector.load %arg2[%c384, %c0_12] : memref<928x512xbf16, #tpu.memory_space<vmem>>, vector<256x64xbf16>
    %27 = arith.truncf %18 : vector<8x256xf32> to vector<8x256xbf16>
    %cst_13 = arith.constant dense<0.000000e+00> : vector<8x64xf32>
    %28 = tpu.matmul %27, %26, %cst_13 {dimension_numbers = #tpu.dot_dimension_numbers<[1], [0], [0], [1], [0, 0, 1, 1], [], []>} : vector<8x256xbf16>, vector<256x64xbf16>, vector<8x64xf32> -> vector<8x64xf32>
    %c2 = arith.constant 2 : index
    %c0_14 = arith.constant 0 : index
    %29 = vector.load %arg3[%c2, %c0_14] : memref<8x512xf32, #tpu.memory_space<vmem>>, vector<1x64xf32>
    %30 = vector.broadcast %29 : vector<1x64xf32> to vector<8x64xf32>
    %31 = arith.addf %28, %30 : vector<8x64xf32>
    %cst_15 = arith.constant 0.000000e+00 : f32
    %32 = vector.broadcast %cst_15 : f32 to vector<8x64xf32>
    %33 = arith.maximumf %31, %32 : vector<8x64xf32>
    %c640 = arith.constant 640 : index
    %c0_16 = arith.constant 0 : index
    %34 = vector.load %arg2[%c640, %c0_16] : memref<928x512xbf16, #tpu.memory_space<vmem>>, vector<64x128xbf16>
    %35 = arith.truncf %33 : vector<8x64xf32> to vector<8x64xbf16>
    %cst_17 = arith.constant dense<0.000000e+00> : vector<8x128xf32>
    %36 = tpu.matmul %35, %34, %cst_17 {dimension_numbers = #tpu.dot_dimension_numbers<[1], [0], [0], [1], [0, 0, 1, 1], [], []>} : vector<8x64xbf16>, vector<64x128xbf16>, vector<8x128xf32> -> vector<8x128xf32>
    %c3 = arith.constant 3 : index
    %c0_18 = arith.constant 0 : index
    %37 = vector.load %arg3[%c3, %c0_18] : memref<8x512xf32, #tpu.memory_space<vmem>>, vector<1x128xf32>
    %38 = vector.broadcast %37 : vector<1x128xf32> to vector<8x128xf32>
    %39 = arith.addf %36, %38 : vector<8x128xf32>
    %cst_19 = arith.constant 0.000000e+00 : f32
    %40 = vector.broadcast %cst_19 : f32 to vector<8x128xf32>
    %41 = arith.maximumf %39, %40 : vector<8x128xf32>
    %42 = vector.shape_cast %2 : vector<1x128xi1> to vector<1x128xi1>
    %43 = vector.broadcast %42 : vector<1x128xi1> to vector<8x128xi1>
    %44 = arith.select %43, %41, %39 : vector<8x128xi1>, vector<8x128xf32>
    %c704 = arith.constant 704 : index
    %c0_20 = arith.constant 0 : index
    %45 = vector.load %arg2[%c704, %c0_20] : memref<928x512xbf16, #tpu.memory_space<vmem>>, vector<128x64xbf16>
    %46 = arith.truncf %44 : vector<8x128xf32> to vector<8x128xbf16>
    %cst_21 = arith.constant dense<0.000000e+00> : vector<8x64xf32>
    %47 = tpu.matmul %46, %45, %cst_21 {dimension_numbers = #tpu.dot_dimension_numbers<[1], [0], [0], [1], [0, 0, 1, 1], [], []>} : vector<8x128xbf16>, vector<128x64xbf16>, vector<8x64xf32> -> vector<8x64xf32>
    %48 = arith.addf %19, %47 : vector<8x64xf32>
    %cst_22 = arith.constant 0.000000e+00 : f32
    %49 = vector.broadcast %cst_22 : f32 to vector<8x64xf32>
    %50 = arith.maximumf %48, %49 : vector<8x64xf32>
    %c832 = arith.constant 832 : index
    %c0_23 = arith.constant 0 : index
    %51 = vector.load %arg2[%c832, %c0_23] : memref<928x512xbf16, #tpu.memory_space<vmem>>, vector<64x32xbf16>
    %52 = arith.truncf %50 : vector<8x64xf32> to vector<8x64xbf16>
    %cst_24 = arith.constant dense<0.000000e+00> : vector<8x32xf32>
    %53 = tpu.matmul %52, %51, %cst_24 {dimension_numbers = #tpu.dot_dimension_numbers<[1], [0], [0], [1], [0, 0, 1, 1], [], []>} : vector<8x64xbf16>, vector<64x32xbf16>, vector<8x32xf32> -> vector<8x32xf32>
    %c5 = arith.constant 5 : index
    %c0_25 = arith.constant 0 : index
    %54 = vector.load %arg3[%c5, %c0_25] : memref<8x512xf32, #tpu.memory_space<vmem>>, vector<1x32xf32>
    %55 = vector.broadcast %54 : vector<1x32xf32> to vector<8x32xf32>
    %56 = arith.addf %53, %55 : vector<8x32xf32>
    %cst_26 = arith.constant 0.000000e+00 : f32
    %57 = vector.broadcast %cst_26 : f32 to vector<8x32xf32>
    %58 = arith.maximumf %56, %57 : vector<8x32xf32>
    %c896 = arith.constant 896 : index
    %c0_27 = arith.constant 0 : index
    %59 = vector.load %arg2[%c896, %c0_27] : memref<928x512xbf16, #tpu.memory_space<vmem>>, vector<32x128xbf16>
    %60 = arith.truncf %58 : vector<8x32xf32> to vector<8x32xbf16>
    %cst_28 = arith.constant dense<0.000000e+00> : vector<8x128xf32>
    %61 = tpu.matmul %60, %59, %cst_28 {dimension_numbers = #tpu.dot_dimension_numbers<[1], [0], [0], [1], [0, 0, 1, 1], [], []>} : vector<8x32xbf16>, vector<32x128xbf16>, vector<8x128xf32> -> vector<8x128xf32>
    %c6 = arith.constant 6 : index
    %c0_29 = arith.constant 0 : index
    %62 = vector.load %arg3[%c6, %c0_29] : memref<8x512xf32, #tpu.memory_space<vmem>>, vector<1x128xf32>
    %63 = vector.broadcast %62 : vector<1x128xf32> to vector<8x128xf32>
    %64 = arith.addf %61, %63 : vector<8x128xf32>
    %c0_30 = arith.constant 0 : index
    %c0_31 = arith.constant 0 : index
    %65 = vector.load %arg4[%c0_30, %c0_31] : memref<8x384xf32, #tpu.memory_space<vmem>>, vector<8x128xf32>
    tpu.vector_store %arg4[%c0_30, %c0_31], %64 {strides = array<i32>} : memref<8x384xf32, #tpu.memory_space<vmem>>, vector<8x128xf32>,
    %c0_32 = arith.constant 0 : index
    %c128_33 = arith.constant 128 : index
    %66 = vector.load %arg4[%c0_32, %c128_33] : memref<8x384xf32, #tpu.memory_space<vmem>>, vector<8x128xf32>
    tpu.vector_store %arg4[%c0_32, %c128_33], %25 {strides = array<i32>} : memref<8x384xf32, #tpu.memory_space<vmem>>, vector<8x128xf32>,
    %c0_34 = arith.constant 0 : index
    %c256 = arith.constant 256 : index
    %67 = vector.load %arg4[%c0_34, %c256] : memref<8x384xf32, #tpu.memory_space<vmem>>, vector<8x128xf32>
    tpu.vector_store %arg4[%c0_34, %c256], %44 {strides = array<i32>} : memref<8x384xf32, #tpu.memory_space<vmem>>, vector<8x128xf32>,
    return
  }
  func.func @transform_0(%arg0: i32) -> (i32, i32) {
    %c0_i32 = arith.constant 0 : i32
    %c0_i32_0 = arith.constant 0 : i32
    return %arg0, %c0_i32 : i32, i32
  }
  func.func @transform_1(%arg0: i32) -> (i32, i32) {
    %c0_i32 = arith.constant 0 : i32
    %c0_i32_0 = arith.constant 0 : i32
    %c0_i32_1 = arith.constant 0 : i32
    return %c0_i32, %c0_i32_0 : i32, i32
  }
  func.func @transform_2(%arg0: i32) -> (i32, i32) {
    %c0_i32 = arith.constant 0 : i32
    %c0_i32_0 = arith.constant 0 : i32
    %c0_i32_1 = arith.constant 0 : i32
    return %c0_i32, %c0_i32_0 : i32, i32
  }
  func.func @transform_3(%arg0: i32) -> (i32, i32) {
    %c0_i32 = arith.constant 0 : i32
    %c0_i32_0 = arith.constant 0 : i32
    return %arg0, %c0_i32 : i32, i32
  }
}

</mosaic_0001>

<llo_original>
// kernel: reverse
$region0: #{reverse}
  %s0 = inlined_call_operand.vmem [shape: f32[4,8], index: 0, kind: input, shape index: {}]
  %s1 = inlined_call_operand.vmem [shape: f32[4,8], index: 1, kind: output, shape index: {}]
  %v2 = vlaneseq
  %v3 = vsub.s32 7, %v2
  %4 = vset.pattern.permute.xlu0 %v3
  $region1: #{reverse} parent=0
    #allocation0 [shape = 'u8[4096]{0}', space=vmem, size = 0x1000, scoped, tag = 'operand span for operand 0']
    #allocation1 [shape = 'u8[2048]{0}', space=vmem, size = 0x800, scoped, tag = 'packed  for operand 0']
    #allocation2 [shape = 'u8[4096]{0}', space=vmem, size = 0x1000, scoped, tag = 'operand span for operand 1']
    #allocation3 [shape = 'u8[2048]{0}', space=vmem, size = 0x800, scoped, tag = 'packed  for operand 1']
    // Predicated region
    $region2: #{reverse} parent=1 // pred_check
      _
    $region3: #{reverse} parent=1 // pred_check_branch
      %6 = sbr.rel (0) target = $region5
    $region4: #{reverse} parent=1 // pred_region
      // Predicated region
      $region6: #{reverse} parent=4 // pred_check
        _
      $region7: #{reverse} parent=4 // pred_check_branch
        %8 = sbr.rel target = $region9
      $region8: #{reverse} parent=4 // pred_region
        // Predicated region
        $region21: #{reverse} parent=8 // pred_check
          _
        $region22: #{reverse} parent=8 // pred_check_branch
          %24 = sbr.rel (0) target = $region24
        $region23: #{reverse} parent=8 // pred_region
          %s26 = ssub.s32 16, 1
          loop: start=0, step=1, limit=1
          $region25: #{reverse} parent=23 // loop_pre_header
            _
          $region26: #{reverse} parent=23 // loop_header
            %s28 = sphi 0, %s32
            %p29 = scmp.ge.s32.totalorder %s28, 1
            %s33 = sphi %s0, %s0
            %s34 = sphi [#allocation1], [#allocation1]
          $region27: #{reverse} parent=23 // loop_header_branch
            %31 = sbr.rel (%p29) target = $region31
          $region28: #{reverse} parent=23 // loop_body
            %v35 = vld [vmem:[%s33] sm:%s26]
            %36 = vst [vmem:[%s34] sm:%s26] %v35
          $region29: #{reverse} parent=23 // loop_footer
            %s32 = sadd.s32 1, %s28
          $region30: #{reverse} parent=23 // loop_footer_branch
            %27 = sbr.rel target = $region26
          $region31: #{reverse} parent=23 // loop_exit
            _
        $region24: #{reverse} parent=8 // pred_fallthru
          _
      $region9: #{reverse} parent=4 // pred_fallthru
        _
      // Predicated region
      $region10: #{reverse} parent=4 // pred_check
        _
      $region11: #{reverse} parent=4 // pred_check_branch
        %10 = sbr.rel (0) target = $region13
      $region12: #{reverse} parent=4 // pred_region
        %s12 = ssub.s32 16, 1
        loop: start=0, step=1, limit=1
        $region14: #{reverse} parent=12 // loop_pre_header
          _
        $region15: #{reverse} parent=12 // loop_header
          %s14 = sphi 0, %s18
          %p15 = scmp.ge.s32.totalorder %s14, 1
          %s19 = sphi %s0, %s0
          %s20 = sphi [#allocation1], [#allocation1]
        $region16: #{reverse} parent=12 // loop_header_branch
          %17 = sbr.rel (%p15) target = $region20
        $region17: #{reverse} parent=12 // loop_body
          %v21 = vld [vmem:[%s19] sm:%s12]
          %22 = vst [vmem:[%s20] sm:%s12] %v21
        $region18: #{reverse} parent=12 // loop_footer
          %s18 = sadd.s32 1, %s14
        $region19: #{reverse} parent=12 // loop_footer_branch
          %13 = sbr.rel target = $region15
        $region20: #{reverse} parent=12 // loop_exit
          _
      $region13: #{reverse} parent=4 // pred_fallthru
        _
    $region5: #{reverse} parent=1 // pred_fallthru
      _
    %37 = vnop
    %s39 = ssub.s32 16, 1
    %v40 = vld [vmem:[#allocation1] sm:%s39]
    %41 = vst [vmem:[#allocation0] sm:%s39] %v40
    %v42 = vld [vmem:[#allocation0] sm:$0xff]
    %43 = vperm.xlu0 %4, %v42
    %v44 = vpop.permute.xlu0 %43
    %45 = vst [vmem:[#allocation2] sm:$0xff] %v44
    %s47 = ssub.s32 16, 1
    %v48 = vld [vmem:[#allocation2] sm:%s47]
    %s50 = ssub.s32 16, 1
    %51 = vst [vmem:[#allocation3] sm:%s50] %v48
    // Predicated region
    $region32: #{reverse} parent=1 // pred_check
      _
    $region33: #{reverse} parent=1 // pred_check_branch
      %53 = sbr.rel (0) target = $region35
    $region34: #{reverse} parent=1 // pred_region
      // Predicated region
      $region36: #{reverse} parent=34 // pred_check
        _
      $region37: #{reverse} parent=34 // pred_check_branch
        %55 = sbr.rel target = $region39
      $region38: #{reverse} parent=34 // pred_region
        // Predicated region
        $region51: #{reverse} parent=38 // pred_check
          _
        $region52: #{reverse} parent=38 // pred_check_branch
          %71 = sbr.rel (0) target = $region54
        $region53: #{reverse} parent=38 // pred_region
          %s73 = ssub.s32 16, 1
          loop: start=0, step=1, limit=1
          $region55: #{reverse} parent=53 // loop_pre_header
            _
          $region56: #{reverse} parent=53 // loop_header
            %s75 = sphi 0, %s79
            %p76 = scmp.ge.s32.totalorder %s75, 1
            %s80 = sphi [#allocation3], [#allocation3]
            %s81 = sphi %s1, %s1
          $region57: #{reverse} parent=53 // loop_header_branch
            %78 = sbr.rel (%p76) target = $region61
          $region58: #{reverse} parent=53 // loop_body
            %v82 = vld [vmem:[%s80] sm:%s73]
            %83 = vst [vmem:[%s81] sm:%s73] %v82
          $region59: #{reverse} parent=53 // loop_footer
            %s79 = sadd.s32 1, %s75
          $region60: #{reverse} parent=53 // loop_footer_branch
            %74 = sbr.rel target = $region56
          $region61: #{reverse} parent=53 // loop_exit
            _
        $region54: #{reverse} parent=38 // pred_fallthru
          _
      $region39: #{reverse} parent=34 // pred_fallthru
        _
      // Predicated region
      $region40: #{reverse} parent=34 // pred_check
        _
      $region41: #{reverse} parent=34 // pred_check_branch
        %57 = sbr.rel (0) target = $region43
      $region42: #{reverse} parent=34 // pred_region
        %s59 = ssub.s32 16, 1
        loop: start=0, step=1, limit=1
        $region44: #{reverse} parent=42 // loop_pre_header
          _
        $region45: #{reverse} parent=42 // loop_header
          %s61 = sphi 0, %s65
          %p62 = scmp.ge.s32.totalorder %s61, 1
          %s66 = sphi [#allocation3], [#allocation3]
          %s67 = sphi %s1, %s1
        $region46: #{reverse} parent=42 // loop_header_branch
          %64 = sbr.rel (%p62) target = $region50
        $region47: #{reverse} parent=42 // loop_body
          %v68 = vld [vmem:[%s66] sm:%s59]
          %69 = vst [vmem:[%s67] sm:%s59] %v68
        $region48: #{reverse} parent=42 // loop_footer
          %s65 = sadd.s32 1, %s61
        $region49: #{reverse} parent=42 // loop_footer_branch
          %60 = sbr.rel target = $region45
        $region50: #{reverse} parent=42 // loop_exit
          _
      $region43: #{reverse} parent=34 // pred_fallthru
        _
    $region35: #{reverse} parent=1 // pred_fallthru
      _
    %84 = vnop

// kernel: forward.1
$region0: #{forward.1}
  #allocation0 [shape = 'u32[]', space=smem, size = 0x4, offset = 0x4, fixed_abs, tag = 'smem constant byte address 0x4 - core index']
  #allocation1 [shape = 'u32[72,128]{1,0:T(1,128)}', space=vmem, size = 0x9000, scoped, tag = 'internal scratch']
  %s0 = inlined_call_operand.vmem [shape: f32[8,128], index: 0, kind: input, shape index: {}]
  %s1 = inlined_call_operand.vmem [shape: bf16[928,512], index: 1, kind: input, shape index: {}]
  %s2 = inlined_call_operand.vmem [shape: f32[8,512], index: 2, kind: input, shape index: {}]
  %s3 = inlined_call_operand.vmem [shape: f32[8,384], index: 3, kind: output, shape index: {}]
  %s4 = sld [smem:[#allocation0]]
  $region22: #{forward.1} parent=0
    _
  %s6 = ssub.s32 1, %s4
  %s7 = scalar_select 0, %s6, %s4
  // Predicated region
  $region2: #{forward.1} parent=0 // pred_check
    _
  $region3: #{forward.1} parent=0 // pred_check_branch
    %9 = sbr.rel (0) target = $region5
  $region4: #{forward.1} parent=0 // pred_region
    _
  $region5: #{forward.1} parent=0 // pred_fallthru
    _
  // Predicated region
  $region6: #{forward.1} parent=0 // pred_check
    _
  $region7: #{forward.1} parent=0 // pred_check_branch
    %11 = sbr.rel (0) target = $region9
  $region8: #{forward.1} parent=0 // pred_region
    _
  $region9: #{forward.1} parent=0 // pred_fallthru
    _
  // Predicated region
  $region10: #{forward.1} parent=0 // pred_check
    _
  $region11: #{forward.1} parent=0 // pred_check_branch
    %13 = sbr.rel (0) target = $region13
  $region12: #{forward.1} parent=0 // pred_region
    _
  $region13: #{forward.1} parent=0 // pred_fallthru
    _
  %v15 = vld [vmem:[%s2 + $0x7] ss:$0 sm:$0xff]
  %vm16 = vcmp.gt.f32.partialorder %v15, 0.5
  %v17 = vld [vmem:[%s0] sm:$0xff]
  %v18 = vld [vmem:[%s1] sm:$0xff]
  %v19 = vld [vmem:[%s1 + $0x10] sm:$0xff]
  %v20 = vld [vmem:[%s1 + $0x20] sm:$0xff]
  %v21 = vld [vmem:[%s1 + $0x30] sm:$0xff]
  %v22 = vld [vmem:[%s1 + $0x40] sm:$0xff]
  %v23 = vld [vmem:[%s1 + $0x50] sm:$0xff]
  %v24 = vld [vmem:[%s1 + $0x60] sm:$0xff]
  %v25 = vld [vmem:[%s1 + $0x70] sm:$0xff]
  %v26 = vld [vmem:[%s1 + $0x80] sm:$0xff]
  %v27 = vld [vmem:[%s1 + $0x90] sm:$0xff]
  %v28 = vld [vmem:[%s1 + $0xa0] sm:$0xff]
  %v29 = vld [vmem:[%s1 + $0xb0] sm:$0xff]
  %v30 = vld [vmem:[%s1 + $0xc0] sm:$0xff]
  %v31 = vld [vmem:[%s1 + $0xd0] sm:$0xff]
  %v32 = vld [vmem:[%s1 + $0xe0] sm:$0xff]
  %v33 = vld [vmem:[%s1 + $0xf0] sm:$0xff]
  %v34 = vpack.c.bf16 %v17, %v17
  %v35 = vld [vmem:[%s2] ss:$8 sm:$0x3]
  %v37 = vperm.slane %v35, 0
  %v38 = vperm.slane %v35, 1
  %v57 = vunpack.c.l.b16 %v18
  %v58 = vunpack.c.h.b16 %v18
  %v59 = vunpack.c.l.b16 %v19
  %v60 = vunpack.c.h.b16 %v19
  %v61 = vunpack.c.l.b16 %v20
  %v62 = vunpack.c.h.b16 %v20
  %v63 = vunpack.c.l.b16 %v21
  %v64 = vunpack.c.h.b16 %v21
  %v65 = vunpack.c.l.b16 %v22
  %v66 = vunpack.c.h.b16 %v22
  %v67 = vunpack.c.l.b16 %v23
  %v68 = vunpack.c.h.b16 %v23
  %v69 = vunpack.c.l.b16 %v24
  %v70 = vunpack.c.h.b16 %v24
  %v71 = vunpack.c.l.b16 %v25
  %v72 = vunpack.c.h.b16 %v25
  %v73 = vunpack.c.l.b16 %v26
  %v74 = vunpack.c.h.b16 %v26
  %v75 = vunpack.c.l.b16 %v27
  %v76 = vunpack.c.h.b16 %v27
  %v77 = vunpack.c.l.b16 %v28
  %v78 = vunpack.c.h.b16 %v28
  %v79 = vunpack.c.l.b16 %v29
  %v80 = vunpack.c.h.b16 %v29
  %v81 = vunpack.c.l.b16 %v30
  %v82 = vunpack.c.h.b16 %v30
  %v83 = vunpack.c.l.b16 %v31
  %v84 = vunpack.c.h.b16 %v31
  %v85 = vunpack.c.l.b16 %v32
  %v86 = vunpack.c.h.b16 %v32
  %v87 = vunpack.c.l.b16 %v33
  %v88 = vunpack.c.h.b16 %v33
  %v89 = vpack.c.b16 %v59, %v57
  %v90 = vpack.c.b16 %v60, %v58
  %v91 = vpack.c.b16 %v63, %v61
  %v92 = vpack.c.b16 %v64, %v62
  %v93 = vpack.c.b16 %v67, %v65
  %v94 = vpack.c.b16 %v68, %v66
  %v95 = vpack.c.b16 %v71, %v69
  %v96 = vpack.c.b16 %v72, %v70
  %v97 = vpack.c.b16 %v75, %v73
  %v98 = vpack.c.b16 %v76, %v74
  %v99 = vpack.c.b16 %v79, %v77
  %v100 = vpack.c.b16 %v80, %v78
  %v101 = vpack.c.b16 %v83, %v81
  %v102 = vpack.c.b16 %v84, %v82
  %v103 = vpack.c.b16 %v87, %v85
  %v104 = vpack.c.b16 %v88, %v86
  %121 = vmatpush.bf16.msra.mxu0 %v103
  %122 = vmatpush.bf16.msra.mxu0 %v101
  %123 = vmatpush.bf16.msra.mxu0 %v99
  %124 = vmatpush.bf16.msra.mxu0 %v97
  %125 = vmatpush.bf16.msra.mxu0 %v95
  %126 = vmatpush.bf16.msra.mxu0 %v93
  %127 = vmatpush.bf16.msra.mxu0 %v91
  %128 = vmatpush.bf16.msra.mxu0 %v89
  %129 = vmatmul.bf16.gmra.mxu0 %v34
  %v130 = vpop.f32.mrf.mxu0
  %v131 = vadd.f32 %v37, %v130
  %v132 = vpop.f32.mrf.mxu0
  %133 = vdwg.mxu0
  %134 = vmatpush.bf16.msra.mxu0 %v104
  %135 = vmatpush.bf16.msra.mxu0 %v102
  %136 = vmatpush.bf16.msra.mxu0 %v100
  %137 = vmatpush.bf16.msra.mxu0 %v98
  %138 = vmatpush.bf16.msra.mxu0 %v96
  %139 = vmatpush.bf16.msra.mxu0 %v94
  %140 = vmatpush.bf16.msra.mxu0 %v92
  %141 = vmatpush.bf16.msra.mxu0 %v90
  %142 = vmatmul.bf16.gmra.mxu0 %v34
  %v143 = vpop.f32.mrf.mxu0
  %v144 = vadd.f32 %v38, %v143
  %v145 = vpop.f32.mrf.mxu0
  %146 = vdwg.mxu0
  %v147 = vmax.f32 %v131, 0.0
  %v148 = vmax.f32 %v144, 0.0
  %v149 = vld [vmem:[%s1 + $0x100] sm:$0xff]
  %v150 = vld [vmem:[%s1 + $0x108] sm:$0xff]
  %v151 = vld [vmem:[%s1 + $0x110] sm:$0xff]
  %v152 = vld [vmem:[%s1 + $0x118] sm:$0xff]
  %v153 = vld [vmem:[%s1 + $0x120] sm:$0xff]
  %v154 = vld [vmem:[%s1 + $0x128] sm:$0xff]
  %v155 = vld [vmem:[%s1 + $0x130] sm:$0xff]
  %v156 = vld [vmem:[%s1 + $0x138] sm:$0xff]
  %v157 = vld [vmem:[%s1 + $0x140] sm:$0xff]
  %v158 = vld [vmem:[%s1 + $0x148] sm:$0xff]
  %v159 = vld [vmem:[%s1 + $0x150] sm:$0xff]
  %v160 = vld [vmem:[%s1 + $0x158] sm:$0xff]
  %v161 = vld [vmem:[%s1 + $0x160] sm:$0xff]
  %v162 = vld [vmem:[%s1 + $0x168] sm:$0xff]
  %v163 = vld [vmem:[%s1 + $0x170] sm:$0xff]
  %v164 = vld [vmem:[%s1 + $0x178] sm:$0xff]
  %v165 = vld [vmem:[%s1 + $0x180] sm:$0xff]
  %v166 = vld [vmem:[%s1 + $0x188] sm:$0xff]
  %v167 = vld [vmem:[%s1 + $0x190] sm:$0xff]
  %v168 = vld [vmem:[%s1 + $0x198] sm:$0xff]
  %v169 = vld [vmem:[%s1 + $0x1a0] sm:$0xff]
  %v170 = vld [vmem:[%s1 + $0x1a8] sm:$0xff]
  %v171 = vld [vmem:[%s1 + $0x1b0] sm:$0xff]
  %v172 = vld [vmem:[%s1 + $0x1b8] sm:$0xff]
  %v173 = vld [vmem:[%s1 + $0x1c0] sm:$0xff]
  %v174 = vld [vmem:[%s1 + $0x1c8] sm:$0xff]
  %v175 = vld [vmem:[%s1 + $0x1d0] sm:$0xff]
  %v176 = vld [vmem:[%s1 + $0x1d8] sm:$0xff]
  %v177 = vld [vmem:[%s1 + $0x1e0] sm:$0xff]
  %v178 = vld [vmem:[%s1 + $0x1e8] sm:$0xff]
  %v179 = vld [vmem:[%s1 + $0x1f0] sm:$0xff]
  %v180 = vld [vmem:[%s1 + $0x1f8] sm:$0xff]
  %v181 = vld [vmem:[%s1 + $0x200] sm:$0xff]
  %v182 = vld [vmem:[%s1 + $0x208] sm:$0xff]
  %v183 = vld [vmem:[%s1 + $0x210] sm:$0xff]
  %v184 = vld [vmem:[%s1 + $0x218] sm:$0xff]
  %v185 = vld [vmem:[%s1 + $0x220] sm:$0xff]
  %v186 = vld [vmem:[%s1 + $0x228] sm:$0xff]
  %v187 = vld [vmem:[%s1 + $0x230] sm:$0xff]
  %v188 = vld [vmem:[%s1 + $0x238] sm:$0xff]
  %v189 = vld [vmem:[%s1 + $0x240] sm:$0xff]
  %v190 = vld [vmem:[%s1 + $0x248] sm:$0xff]
  %v191 = vld [vmem:[%s1 + $0x250] sm:$0xff]
  %v192 = vld [vmem:[%s1 + $0x258] sm:$0xff]
  %v193 = vld [vmem:[%s1 + $0x260] sm:$0xff]
  %v194 = vld [vmem:[%s1 + $0x268] sm:$0xff]
  %v195 = vld [vmem:[%s1 + $0x270] sm:$0xff]
  %v196 = vld [vmem:[%s1 + $0x278] sm:$0xff]
  %v197 = vld [vmem:[%s1 + $0x280] sm:$0xff]
  %v198 = vld [vmem:[%s1 + $0x288] sm:$0xff]
  %v199 = vld [vmem:[%s1 + $0x290] sm:$0xff]
  %v200 = vld [vmem:[%s1 + $0x298] sm:$0xff]
  %v201 = vld [vmem:[%s1 + $0x2a0] sm:$0xff]
  %v202 = vld [vmem:[%s1 + $0x2a8] sm:$0xff]
  %v203 = vld [vmem:[%s1 + $0x2b0] sm:$0xff]
  %v204 = vld [vmem:[%s1 + $0x2b8] sm:$0xff]
  %v205 = vld [vmem:[%s1 + $0x2c0] sm:$0xff]
  %v206 = vld [vmem:[%s1 + $0x2c8] sm:$0xff]
  %v207 = vld [vmem:[%s1 + $0x2d0] sm:$0xff]
  %v208 = vld [vmem:[%s1 + $0x2d8] sm:$0xff]
  %v209 = vld [vmem:[%s1 + $0x2e0] sm:$0xff]
  %v210 = vld [vmem:[%s1 + $0x2e8] sm:$0xff]
  %v211 = vld [vmem:[%s1 + $0x2f0] sm:$0xff]
  %v212 = vld [vmem:[%s1 + $0x2f8] sm:$0xff]
  %v213 = vpack.c.bf16 %v147, %v147
  %v214 = vpack.c.bf16 %v148, %v148
  %s215 = scalar_lea.vmem %s2, 1
  %v216 = vld [vmem:[%s215] ss:$8 sm:$0xf]
  %v218 = vperm.slane %v216, 0
  %v219 = vperm.slane %v216, 1
  %v220 = vperm.slane %v216, 2
  %v221 = vperm.slane %v216, 3
  %v290 = vunpack.c.l.b16 %v149
  %v291 = vunpack.c.h.b16 %v149
  %v292 = vunpack.c.l.b16 %v150
  %v293 = vunpack.c.h.b16 %v150
  %v294 = vunpack.c.l.b16 %v151
  %v295 = vunpack.c.h.b16 %v151
  %v296 = vunpack.c.l.b16 %v152
  %v297 = vunpack.c.h.b16 %v152
  %v298 = vunpack.c.l.b16 %v153
  %v299 = vunpack.c.h.b16 %v153
  %v300 = vunpack.c.l.b16 %v154
  %v301 = vunpack.c.h.b16 %v154
  %v302 = vunpack.c.l.b16 %v155
  %v303 = vunpack.c.h.b16 %v155
  %v304 = vunpack.c.l.b16 %v156
  %v305 = vunpack.c.h.b16 %v156
  %v306 = vunpack.c.l.b16 %v157
  %v307 = vunpack.c.h.b16 %v157
  %v308 = vunpack.c.l.b16 %v158
  %v309 = vunpack.c.h.b16 %v158
  %v310 = vunpack.c.l.b16 %v159
  %v311 = vunpack.c.h.b16 %v159
  %v312 = vunpack.c.l.b16 %v160
  %v313 = vunpack.c.h.b16 %v160
  %v314 = vunpack.c.l.b16 %v161
  %v315 = vunpack.c.h.b16 %v161
  %v316 = vunpack.c.l.b16 %v162
  %v317 = vunpack.c.h.b16 %v162
  %v318 = vunpack.c.l.b16 %v163
  %v319 = vunpack.c.h.b16 %v163
  %v320 = vunpack.c.l.b16 %v164
  %v321 = vunpack.c.h.b16 %v164
  %v322 = vunpack.c.l.b16 %v165
  %v323 = vunpack.c.h.b16 %v165
  %v324 = vunpack.c.l.b16 %v166
  %v325 = vunpack.c.h.b16 %v166
  %v326 = vunpack.c.l.b16 %v167
  %v327 = vunpack.c.h.b16 %v167
  %v328 = vunpack.c.l.b16 %v168
  %v329 = vunpack.c.h.b16 %v168
  %v330 = vunpack.c.l.b16 %v169
  %v331 = vunpack.c.h.b16 %v169
  %v332 = vunpack.c.l.b16 %v170
  %v333 = vunpack.c.h.b16 %v170
  %v334 = vunpack.c.l.b16 %v171
  %v335 = vunpack.c.h.b16 %v171
  %v336 = vunpack.c.l.b16 %v172
  %v337 = vunpack.c.h.b16 %v172
  %v338 = vunpack.c.l.b16 %v173
  %v339 = vunpack.c.h.b16 %v173
  %v340 = vunpack.c.l.b16 %v174
  %v341 = vunpack.c.h.b16 %v174
  %v342 = vunpack.c.l.b16 %v175
  %v343 = vunpack.c.h.b16 %v175
  %v344 = vunpack.c.l.b16 %v176
  %v345 = vunpack.c.h.b16 %v176
  %v346 = vunpack.c.l.b16 %v177
  %v347 = vunpack.c.h.b16 %v177
  %v348 = vunpack.c.l.b16 %v178
  %v349 = vunpack.c.h.b16 %v178
  %v350 = vunpack.c.l.b16 %v179
  %v351 = vunpack.c.h.b16 %v179
  %v352 = vunpack.c.l.b16 %v180
  %v353 = vunpack.c.h.b16 %v180
  %v354 = vunpack.c.l.b16 %v181
  %v355 = vunpack.c.h.b16 %v181
  %v356 = vunpack.c.l.b16 %v182
  %v357 = vunpack.c.h.b16 %v182
  %v358 = vunpack.c.l.b16 %v183
  %v359 = vunpack.c.h.b16 %v183
  %v360 = vunpack.c.l.b16 %v184
  %v361 = vunpack.c.h.b16 %v184
  %v362 = vunpack.c.l.b16 %v185
  %v363 = vunpack.c.h.b16 %v185
  %v364 = vunpack.c.l.b16 %v186
  %v365 = vunpack.c.h.b16 %v186
  %v366 = vunpack.c.l.b16 %v187
  %v367 = vunpack.c.h.b16 %v187
  %v368 = vunpack.c.l.b16 %v188
  %v369 = vunpack.c.h.b16 %v188
  %v370 = vunpack.c.l.b16 %v189
  %v371 = vunpack.c.h.b16 %v189
  %v372 = vunpack.c.l.b16 %v190
  %v373 = vunpack.c.h.b16 %v190
  %v374 = vunpack.c.l.b16 %v191
  %v375 = vunpack.c.h.b16 %v191
  %v376 = vunpack.c.l.b16 %v192
  %v377 = vunpack.c.h.b16 %v192
  %v378 = vunpack.c.l.b16 %v193
  %v379 = vunpack.c.h.b16 %v193
  %v380 = vunpack.c.l.b16 %v194
  %v381 = vunpack.c.h.b16 %v194
  %v382 = vunpack.c.l.b16 %v195
  %v383 = vunpack.c.h.b16 %v195
  %v384 = vunpack.c.l.b16 %v196
  %v385 = vunpack.c.h.b16 %v196
  %v386 = vunpack.c.l.b16 %v197
  %v387 = vunpack.c.h.b16 %v197
  %v388 = vunpack.c.l.b16 %v198
  %v389 = vunpack.c.h.b16 %v198
  %v390 = vunpack.c.l.b16 %v199
  %v391 = vunpack.c.h.b16 %v199
  %v392 = vunpack.c.l.b16 %v200
  %v393 = vunpack.c.h.b16 %v200
  %v394 = vunpack.c.l.b16 %v201
  %v395 = vunpack.c.h.b16 %v201
  %v396 = vunpack.c.l.b16 %v202
  %v397 = vunpack.c.h.b16 %v202
  %v398 = vunpack.c.l.b16 %v203
  %v399 = vunpack.c.h.b16 %v203
  %v400 = vunpack.c.l.b16 %v204
  %v401 = vunpack.c.h.b16 %v204
  %v402 = vunpack.c.l.b16 %v205
  %v403 = vunpack.c.h.b16 %v205
  %v404 = vunpack.c.l.b16 %v206
  %v405 = vunpack.c.h.b16 %v206
  %v406 = vunpack.c.l.b16 %v207
  %v407 = vunpack.c.h.b16 %v207
  %v408 = vunpack.c.l.b16 %v208
  %v409 = vunpack.c.h.b16 %v208
  %v410 = vunpack.c.l.b16 %v209
  %v411 = vunpack.c.h.b16 %v209
  %v412 = vunpack.c.l.b16 %v210
  %v413 = vunpack.c.h.b16 %v210
  %v414 = vunpack.c.l.b16 %v211
  %v415 = vunpack.c.h.b16 %v211
  %v416 = vunpack.c.l.b16 %v212
  %v417 = vunpack.c.h.b16 %v212
  %v418 = vpack.c.b16 %v294, %v290
  %v419 = vpack.c.b16 %v295, %v291
  %v420 = vpack.c.b16 %v296, %v292
  %v421 = vpack.c.b16 %v297, %v293
  %v422 = vpack.c.b16 %v302, %v298
  %v423 = vpack.c.b16 %v303, %v299
  %v424 = vpack.c.b16 %v304, %v300
  %v425 = vpack.c.b16 %v305, %v301
  %v426 = vpack.c.b16 %v310, %v306
  %v427 = vpack.c.b16 %v311, %v307
  %v428 = vpack.c.b16 %v312, %v308
  %v429 = vpack.c.b16 %v313, %v309
  %v430 = vpack.c.b16 %v318, %v314
  %v431 = vpack.c.b16 %v319, %v315
  %v432 = vpack.c.b16 %v320, %v316
  %v433 = vpack.c.b16 %v321, %v317
  %v434 = vpack.c.b16 %v326, %v322
  %v435 = vpack.c.b16 %v327, %v323
  %v436 = vpack.c.b16 %v328, %v324
  %v437 = vpack.c.b16 %v329, %v325
  %v438 = vpack.c.b16 %v334, %v330
  %v439 = vpack.c.b16 %v335, %v331
  %v440 = vpack.c.b16 %v336, %v332
  %v441 = vpack.c.b16 %v337, %v333
  %v442 = vpack.c.b16 %v342, %v338
  %v443 = vpack.c.b16 %v343, %v339
  %v444 = vpack.c.b16 %v344, %v340
  %v445 = vpack.c.b16 %v345, %v341
  %v446 = vpack.c.b16 %v350, %v346
  %v447 = vpack.c.b16 %v351, %v347
  %v448 = vpack.c.b16 %v352, %v348
  %v449 = vpack.c.b16 %v353, %v349
  %v450 = vpack.c.b16 %v358, %v354
  %v451 = vpack.c.b16 %v359, %v355
  %v452 = vpack.c.b16 %v360, %v356
  %v453 = vpack.c.b16 %v361, %v357
  %v454 = vpack.c.b16 %v366, %v362
  %v455 = vpack.c.b16 %v367, %v363
  %v456 = vpack.c.b16 %v368, %v364
  %v457 = vpack.c.b16 %v369, %v365
  %v458 = vpack.c.b16 %v374, %v370
  %v459 = vpack.c.b16 %v375, %v371
  %v460 = vpack.c.b16 %v376, %v372
  %v461 = vpack.c.b16 %v377, %v373
  %v462 = vpack.c.b16 %v382, %v378
  %v463 = vpack.c.b16 %v383, %v379
  %v464 = vpack.c.b16 %v384, %v380
  %v465 = vpack.c.b16 %v385, %v381
  %v466 = vpack.c.b16 %v390, %v386
  %v467 = vpack.c.b16 %v391, %v387
  %v468 = vpack.c.b16 %v392, %v388
  %v469 = vpack.c.b16 %v393, %v389
  %v470 = vpack.c.b16 %v398, %v394
  %v471 = vpack.c.b16 %v399, %v395
  %v472 = vpack.c.b16 %v400, %v396
  %v473 = vpack.c.b16 %v401, %v397
  %v474 = vpack.c.b16 %v406, %v402
  %v475 = vpack.c.b16 %v407, %v403
  %v476 = vpack.c.b16 %v408, %v404
  %v477 = vpack.c.b16 %v409, %v405
  %v478 = vpack.c.b16 %v414, %v410
  %v479 = vpack.c.b16 %v415, %v411
  %v480 = vpack.c.b16 %v416, %v412
  %v481 = vpack.c.b16 %v417, %v413
  %546 = vmatpush.bf16.msra.mxu0 %v446
  %547 = vmatpush.bf16.msra.mxu0 %v442
  %548 = vmatpush.bf16.msra.mxu0 %v438
  %549 = vmatpush.bf16.msra.mxu0 %v434
  %550 = vmatpush.bf16.msra.mxu0 %v430
  %551 = vmatpush.bf16.msra.mxu0 %v426
  %552 = vmatpush.bf16.msra.mxu0 %v422
  %553 = vmatpush.bf16.msra.mxu0 %v418
  %554 = vmatmul.bf16.gmra.mxu0 %v213
  %v555 = vpop.f32.mrf.mxu0
  %v556 = vadd.f32 %v218, %v555
  %v557 = vpop.f32.mrf.mxu0
  %558 = vdwg.mxu0
  %559 = vmatpush.bf16.msra.mxu0 %v478
  %560 = vmatpush.bf16.msra.mxu0 %v474
  %561 = vmatpush.bf16.msra.mxu0 %v470
  %562 = vmatpush.bf16.msra.mxu0 %v466
  %563 = vmatpush.bf16.msra.mxu0 %v462
  %564 = vmatpush.bf16.msra.mxu0 %v458
  %565 = vmatpush.bf16.msra.mxu0 %v454
  %566 = vmatpush.bf16.msra.mxu0 %v450
  %567 = vmatmul.bf16.gmra.mxu0 %v214
  %v568 = vpop.f32.mrf.mxu0
  %v569 = vadd.f32 %v556, %v568
  %v570 = vpop.f32.mrf.mxu0
  %571 = vdwg.mxu0
  %572 = vmatpush.bf16.msra.mxu0 %v447
  %573 = vmatpush.bf16.msra.mxu0 %v443
  %574 = vmatpush.bf16.msra.mxu0 %v439
  %575 = vmatpush.bf16.msra.mxu0 %v435
  %576 = vmatpush.bf16.msra.mxu0 %v431
  %577 = vmatpush.bf16.msra.mxu0 %v427
  %578 = vmatpush.bf16.msra.mxu0 %v423
  %579 = vmatpush.bf16.msra.mxu0 %v419
  %580 = vmatmul.bf16.gmra.mxu0 %v213
  %v581 = vpop.f32.mrf.mxu0
  %v582 = vadd.f32 %v219, %v581
  %v583 = vpop.f32.mrf.mxu0
  %584 = vdwg.mxu0
  %585 = vmatpush.bf16.msra.mxu0 %v479
  %586 = vmatpush.bf16.msra.mxu0 %v475
  %587 = vmatpush.bf16.msra.mxu0 %v471
  %588 = vmatpush.bf16.msra.mxu0 %v467
  %589 = vmatpush.bf16.msra.mxu0 %v463
  %590 = vmatpush.bf16.msra.mxu0 %v459
  %591 = vmatpush.bf16.msra.mxu0 %v455
  %592 = vmatpush.bf16.msra.mxu0 %v451
  %593 = vmatmul.bf16.gmra.mxu0 %v214
  %v594 = vpop.f32.mrf.mxu0
  %v595 = vadd.f32 %v582, %v594
  %v596 = vpop.f32.mrf.mxu0
  %597 = vdwg.mxu0
  %598 = vmatpush.bf16.msra.mxu0 %v448
  %599 = vmatpush.bf16.msra.mxu0 %v444
  %600 = vmatpush.bf16.msra.mxu0 %v440
  %601 = vmatpush.bf16.msra.mxu0 %v436
  %602 = vmatpush.bf16.msra.mxu0 %v432
  %603 = vmatpush.bf16.msra.mxu0 %v428
  %604 = vmatpush.bf16.msra.mxu0 %v424
  %605 = vmatpush.bf16.msra.mxu0 %v420
  %606 = vmatmul.bf16.gmra.mxu0 %v213
  %v607 = vpop.f32.mrf.mxu0
  %v608 = vadd.f32 %v220, %v607
  %v609 = vpop.f32.mrf.mxu0
  %610 = vdwg.mxu0
  %611 = vmatpush.bf16.msra.mxu0 %v480
  %612 = vmatpush.bf16.msra.mxu0 %v476
  %613 = vmatpush.bf16.msra.mxu0 %v472
  %614 = vmatpush.bf16.msra.mxu0 %v468
  %615 = vmatpush.bf16.msra.mxu0 %v464
  %616 = vmatpush.bf16.msra.mxu0 %v460
  %617 = vmatpush.bf16.msra.mxu0 %v456
  %618 = vmatpush.bf16.msra.mxu0 %v452
  %619 = vmatmul.bf16.gmra.mxu0 %v214
  %v620 = vpop.f32.mrf.mxu0
  %v621 = vadd.f32 %v608, %v620
  %v622 = vpop.f32.mrf.mxu0
  %623 = vdwg.mxu0
  %624 = vmatpush.bf16.msra.mxu0 %v449
  %625 = vmatpush.bf16.msra.mxu0 %v445
  %626 = vmatpush.bf16.msra.mxu0 %v441
  %627 = vmatpush.bf16.msra.mxu0 %v437
  %628 = vmatpush.bf16.msra.mxu0 %v433
  %629 = vmatpush.bf16.msra.mxu0 %v429
  %630 = vmatpush.bf16.msra.mxu0 %v425
  %631 = vmatpush.bf16.msra.mxu0 %v421
  %632 = vmatmul.bf16.gmra.mxu0 %v213
  %v633 = vpop.f32.mrf.mxu0
  %v634 = vadd.f32 %v221, %v633
  %v635 = vpop.f32.mrf.mxu0
  %636 = vdwg.mxu0
  %637 = vmatpush.bf16.msra.mxu0 %v481
  %638 = vmatpush.bf16.msra.mxu0 %v477
  %639 = vmatpush.bf16.msra.mxu0 %v473
  %640 = vmatpush.bf16.msra.mxu0 %v469
  %641 = vmatpush.bf16.msra.mxu0 %v465
  %642 = vmatpush.bf16.msra.mxu0 %v461
  %643 = vmatpush.bf16.msra.mxu0 %v457
  %644 = vmatpush.bf16.msra.mxu0 %v453
  %645 = vmatmul.bf16.gmra.mxu0 %v214
  %v646 = vpop.f32.mrf.mxu0
  %v647 = vadd.f32 %v634, %v646
  %v648 = vpop.f32.mrf.mxu0
  %649 = vdwg.mxu0
  %v650 = vmax.f32 %v647, 0.0
  %v651 = vsel %vm16, 1, 0
  %vm652 = vcmp.eq.s32.totalorder %v651, 1
  %v653 = vsel %vm652, %v650, %v647
  %v654 = vld [vmem:[%s1 + $0x300] sm:$0xf]
  %v655 = vld [vmem:[%s1 + $0x310] sm:$0xf]
  %v656 = vld [vmem:[%s1 + $0x320] sm:$0xf]
  %v657 = vld [vmem:[%s1 + $0x330] sm:$0xf]
  %v658 = vld [vmem:[%s1 + $0x340] sm:$0xf]
  %v659 = vld [vmem:[%s1 + $0x350] sm:$0xf]
  %v660 = vld [vmem:[%s1 + $0x360] sm:$0xf]
  %v661 = vld [vmem:[%s1 + $0x370] sm:$0xf]
  %v662 = vld [vmem:[%s1 + $0x380] sm:$0xf]
  %v663 = vld [vmem:[%s1 + $0x390] sm:$0xf]
  %v664 = vld [vmem:[%s1 + $0x3a0] sm:$0xf]
  %v665 = vld [vmem:[%s1 + $0x3b0] sm:$0xf]
  %v666 = vld [vmem:[%s1 + $0x3c0] sm:$0xf]
  %v667 = vld [vmem:[%s1 + $0x3d0] sm:$0xf]
  %v668 = vld [vmem:[%s1 + $0x3e0] sm:$0xf]
  %v669 = vld [vmem:[%s1 + $0x3f0] sm:$0xf]
  %v670 = vld [vmem:[%s1 + $0x400] sm:$0xf]
  %v671 = vld [vmem:[%s1 + $0x410] sm:$0xf]
  %v672 = vld [vmem:[%s1 + $0x420] sm:$0xf]
  %v673 = vld [vmem:[%s1 + $0x430] sm:$0xf]
  %v674 = vld [vmem:[%s1 + $0x440] sm:$0xf]
  %v675 = vld [vmem:[%s1 + $0x450] sm:$0xf]
  %v676 = vld [vmem:[%s1 + $0x460] sm:$0xf]
  %v677 = vld [vmem:[%s1 + $0x470] sm:$0xf]
  %v678 = vld [vmem:[%s1 + $0x480] sm:$0xf]
  %v679 = vld [vmem:[%s1 + $0x490] sm:$0xf]
  %v680 = vld [vmem:[%s1 + $0x4a0] sm:$0xf]
  %v681 = vld [vmem:[%s1 + $0x4b0] sm:$0xf]
  %v682 = vld [vmem:[%s1 + $0x4c0] sm:$0xf]
  %v683 = vld [vmem:[%s1 + $0x4d0] sm:$0xf]
  %v684 = vld [vmem:[%s1 + $0x4e0] sm:$0xf]
  %v685 = vld [vmem:[%s1 + $0x4f0] sm:$0xf]
  %v686 = vpack.c.bf16 %v569, %v569
  %v687 = vpack.c.bf16 %v595, %v595
  %v688 = vld [vmem:[%s2 + $0x2] ss:$0 sm:$0xff]
  %v721 = vunpack.c.l.b16 %v654
  %v722 = vunpack.c.l.b16 %v655
  %v723 = vunpack.c.l.b16 %v656
  %v724 = vunpack.c.l.b16 %v657
  %v725 = vunpack.c.l.b16 %v658
  %v726 = vunpack.c.l.b16 %v659
  %v727 = vunpack.c.l.b16 %v660
  %v728 = vunpack.c.l.b16 %v661
  %v729 = vunpack.c.l.b16 %v662
  %v730 = vunpack.c.l.b16 %v663
  %v731 = vunpack.c.l.b16 %v664
  %v732 = vunpack.c.l.b16 %v665
  %v733 = vunpack.c.l.b16 %v666
  %v734 = vunpack.c.l.b16 %v667
  %v735 = vunpack.c.l.b16 %v668
  %v736 = vunpack.c.l.b16 %v669
  %v737 = vunpack.c.l.b16 %v670
  %v738 = vunpack.c.l.b16 %v671
  %v739 = vunpack.c.l.b16 %v672
  %v740 = vunpack.c.l.b16 %v673
  %v741 = vunpack.c.l.b16 %v674
  %v742 = vunpack.c.l.b16 %v675
  %v743 = vunpack.c.l.b16 %v676
  %v744 = vunpack.c.l.b16 %v677
  %v745 = vunpack.c.l.b16 %v678
  %v746 = vunpack.c.l.b16 %v679
  %v747 = vunpack.c.l.b16 %v680
  %v748 = vunpack.c.l.b16 %v681
  %v749 = vunpack.c.l.b16 %v682
  %v750 = vunpack.c.l.b16 %v683
  %v751 = vunpack.c.l.b16 %v684
  %v752 = vunpack.c.l.b16 %v685
  %v753 = vpack.c.b16 %v722, %v721
  %v754 = vpack.c.b16 %v724, %v723
  %v755 = vpack.c.b16 %v726, %v725
  %v756 = vpack.c.b16 %v728, %v727
  %v757 = vpack.c.b16 %v730, %v729
  %v758 = vpack.c.b16 %v732, %v731
  %v759 = vpack.c.b16 %v734, %v733
  %v760 = vpack.c.b16 %v736, %v735
  %v761 = vpack.c.b16 %v738, %v737
  %v762 = vpack.c.b16 %v740, %v739
  %v763 = vpack.c.b16 %v742, %v741
  %v764 = vpack.c.b16 %v744, %v743
  %v765 = vpack.c.b16 %v746, %v745
  %v766 = vpack.c.b16 %v748, %v747
  %v767 = vpack.c.b16 %v750, %v749
  %v768 = vpack.c.b16 %v752, %v751
  %785 = vmatpush.bf16.msra.mxu0 %v760
  %786 = vmatpush.bf16.msra.mxu0 %v759
  %787 = vmatpush.bf16.msra.mxu0 %v758
  %788 = vmatpush.bf16.msra.mxu0 %v757
  %789 = vmatpush.bf16.msra.mxu0 %v756
  %790 = vmatpush.bf16.msra.mxu0 %v755
  %791 = vmatpush.bf16.msra.mxu0 %v754
  %792 = vmatpush.bf16.msra.mxu0 %v753
  %793 = vmatmul.bf16.gmra.mxu0 %v686
  %v794 = vpop.f32.mrf.mxu0
  %v795 = vadd.f32 %v688, %v794
  %v796 = vpop.f32.mrf.mxu0
  %797 = vdwg.mxu0
  %798 = vmatpush.bf16.msra.mxu0 %v768
  %799 = vmatpush.bf16.msra.mxu0 %v767
  %800 = vmatpush.bf16.msra.mxu0 %v766
  %801 = vmatpush.bf16.msra.mxu0 %v765
  %802 = vmatpush.bf16.msra.mxu0 %v764
  %803 = vmatpush.bf16.msra.mxu0 %v763
  %804 = vmatpush.bf16.msra.mxu0 %v762
  %805 = vmatpush.bf16.msra.mxu0 %v761
  %806 = vmatmul.bf16.gmra.mxu0 %v687
  %v807 = vpop.f32.mrf.mxu0
  %v808 = vadd.f32 %v795, %v807
  %v809 = vpop.f32.mrf.mxu0
  %810 = vdwg.mxu0
  %v811 = vmax.f32 %v808, 0.0
  %v812 = vld [vmem:[%s1 + $0x500] sm:$0xf]
  %v813 = vld [vmem:[%s1 + $0x510] sm:$0xf]
  %v814 = vld [vmem:[%s1 + $0x520] sm:$0xf]
  %v815 = vld [vmem:[%s1 + $0x530] sm:$0xf]
  %v816 = vld [vmem:[%s1 + $0x540] sm:$0xf]
  %v817 = vld [vmem:[%s1 + $0x550] sm:$0xf]
  %v818 = vld [vmem:[%s1 + $0x560] sm:$0xf]
  %v819 = vld [vmem:[%s1 + $0x570] sm:$0xf]
  %v820 = vpack.c.bf16 %v811, %v811
  %v821 = vld [vmem:[%s2 + $0x3] ss:$0 sm:$0xff]
  %v830 = vunpack.c.l.b16 %v812
  %v831 = vunpack.c.l.b16 %v813
  %v832 = vunpack.c.l.b16 %v814
  %v833 = vunpack.c.l.b16 %v815
  %v834 = vunpack.c.l.b16 %v816
  %v835 = vunpack.c.l.b16 %v817
  %v836 = vunpack.c.l.b16 %v818
  %v837 = vunpack.c.l.b16 %v819
  %v838 = vpack.c.b16 %v831, %v830
  %v839 = vpack.c.b16 %v833, %v832
  %v840 = vpack.c.b16 %v835, %v834
  %v841 = vpack.c.b16 %v837, %v836
  %vm846 = vcmask 523264
  %v848 = vsel %vm846, %v820, 0
  %850 = vmatpush.bf16.msra.mxu0 0
  %851 = vmatpush.bf16.msra.mxu0 0
  %852 = vmatpush.bf16.msra.mxu0 0
  %853 = vmatpush.bf16.msra.mxu0 0
  %854 = vmatpush.bf16.msra.mxu0 %v841
  %855 = vmatpush.bf16.msra.mxu0 %v840
  %856 = vmatpush.bf16.msra.mxu0 %v839
  %857 = vmatpush.bf16.msra.mxu0 %v838
  %858 = vmatmul.bf16.gmra.mxu0 %v848
  %v859 = vpop.f32.mrf.mxu0
  %v860 = vadd.f32 %v821, %v859
  %v861 = vpop.f32.mrf.mxu0
  %862 = vdwg.mxu0
  %v863 = vmax.f32 %v860, 0.0
  %v864 = vsel %vm652, %v863, %v860
  %v865 = vld [vmem:[%s1 + $0x580] sm:$0xf]
  %v866 = vld [vmem:[%s1 + $0x590] sm:$0xf]
  %v867 = vld [vmem:[%s1 + $0x5a0] sm:$0xf]
  %v868 = vld [vmem:[%s1 + $0x5b0] sm:$0xf]
  %v869 = vld [vmem:[%s1 + $0x5c0] sm:$0xf]
  %v870 = vld [vmem:[%s1 + $0x5d0] sm:$0xf]
  %v871 = vld [vmem:[%s1 + $0x5e0] sm:$0xf]
  %v872 = vld [vmem:[%s1 + $0x5f0] sm:$0xf]
  %v873 = vld [vmem:[%s1 + $0x600] sm:$0xf]
  %v874 = vld [vmem:[%s1 + $0x610] sm:$0xf]
  %v875 = vld [vmem:[%s1 + $0x620] sm:$0xf]
  %v876 = vld [vmem:[%s1 + $0x630] sm:$0xf]
  %v877 = vld [vmem:[%s1 + $0x640] sm:$0xf]
  %v878 = vld [vmem:[%s1 + $0x650] sm:$0xf]
  %v879 = vld [vmem:[%s1 + $0x660] sm:$0xf]
  %v880 = vld [vmem:[%s1 + $0x670] sm:$0xf]
  %v881 = vpack.c.bf16 %v864, %v864
  %v898 = vunpack.c.l.b16 %v865
  %v899 = vunpack.c.l.b16 %v866
  %v900 = vunpack.c.l.b16 %v867
  %v901 = vunpack.c.l.b16 %v868
  %v902 = vunpack.c.l.b16 %v869
  %v903 = vunpack.c.l.b16 %v870
  %v904 = vunpack.c.l.b16 %v871
  %v905 = vunpack.c.l.b16 %v872
  %v906 = vunpack.c.l.b16 %v873
  %v907 = vunpack.c.l.b16 %v874
  %v908 = vunpack.c.l.b16 %v875
  %v909 = vunpack.c.l.b16 %v876
  %v910 = vunpack.c.l.b16 %v877
  %v911 = vunpack.c.l.b16 %v878
  %v912 = vunpack.c.l.b16 %v879
  %v913 = vunpack.c.l.b16 %v880
  %v914 = vpack.c.b16 %v899, %v898
  %v915 = vpack.c.b16 %v901, %v900
  %v916 = vpack.c.b16 %v903, %v902
  %v917 = vpack.c.b16 %v905, %v904
  %v918 = vpack.c.b16 %v907, %v906
  %v919 = vpack.c.b16 %v909, %v908
  %v920 = vpack.c.b16 %v911, %v910
  %v921 = vpack.c.b16 %v913, %v912
  %930 = vmatpush.bf16.msra.mxu0 %v921
  %931 = vmatpush.bf16.msra.mxu0 %v920
  %932 = vmatpush.bf16.msra.mxu0 %v919
  %933 = vmatpush.bf16.msra.mxu0 %v918
  %934 = vmatpush.bf16.msra.mxu0 %v917
  %935 = vmatpush.bf16.msra.mxu0 %v916
  %936 = vmatpush.bf16.msra.mxu0 %v915
  %937 = vmatpush.bf16.msra.mxu0 %v914
  %938 = vmatmul.bf16.gmra.mxu0 %v881
  %v939 = vpop.f32.mrf.mxu0
  %v940 = vadd.f32 0.0, %v939
  %v941 = vpop.f32.mrf.mxu0
  %942 = vdwg.mxu0
  %v943 = vadd.f32 %v621, %v940
  %v944 = vmax.f32 %v943, 0.0
  %v945 = vld [vmem:[%s1 + $0x680] sm:$0xf]
  %v946 = vld [vmem:[%s1 + $0x690] sm:$0xf]
  %v947 = vld [vmem:[%s1 + $0x6a0] sm:$0xf]
  %v948 = vld [vmem:[%s1 + $0x6b0] sm:$0xf]
  %v949 = vld [vmem:[%s1 + $0x6c0] sm:$0xf]
  %v950 = vld [vmem:[%s1 + $0x6d0] sm:$0xf]
  %v951 = vld [vmem:[%s1 + $0x6e0] sm:$0xf]
  %v952 = vld [vmem:[%s1 + $0x6f0] sm:$0xf]
  %v953 = vpack.c.bf16 %v944, %v944
  %v954 = vld [vmem:[%s2 + $0x5] ss:$0 sm:$0xff]
  %v963 = vunpack.c.l.b16 %v945
  %v964 = vunpack.c.l.b16 %v946
  %v965 = vunpack.c.l.b16 %v947
  %v966 = vunpack.c.l.b16 %v948
  %v967 = vunpack.c.l.b16 %v949
  %v968 = vunpack.c.l.b16 %v950
  %v969 = vunpack.c.l.b16 %v951
  %v970 = vunpack.c.l.b16 %v952
  %v971 = vpack.c.b16 %v964, %v963
  %v972 = vpack.c.b16 %v966, %v965
  %v973 = vpack.c.b16 %v968, %v967
  %v974 = vpack.c.b16 %v970, %v969
  %v980 = vsel %vm846, %v953, 0
  %982 = vmatpush.bf16.msra.mxu0 0
  %983 = vmatpush.bf16.msra.mxu0 0
  %984 = vmatpush.bf16.msra.mxu0 0
  %985 = vmatpush.bf16.msra.mxu0 0
  %986 = vmatpush.bf16.msra.mxu0 %v974
  %987 = vmatpush.bf16.msra.mxu0 %v973
  %988 = vmatpush.bf16.msra.mxu0 %v972
  %989 = vmatpush.bf16.msra.mxu0 %v971
  %990 = vmatmul.bf16.gmra.mxu0 %v980
  %v991 = vpop.f32.mrf.mxu0
  %v992 = vadd.f32 %v954, %v991
  %v993 = vpop.f32.mrf.mxu0
  %994 = vdwg.mxu0
  %v995 = vmax.f32 %v992, 0.0
  %v996 = vld [vmem:[%s1 + $0x700] sm:$0xf]
  %v997 = vld [vmem:[%s1 + $0x710] sm:$0xf]
  %v998 = vld [vmem:[%s1 + $0x720] sm:$0xf]
  %v999 = vld [vmem:[%s1 + $0x730] sm:$0xf]
  %v1000 = vpack.c.bf16 %v995, %v995
  %v1001 = vld [vmem:[%s2 + $0x6] ss:$0 sm:$0xff]
  %v1006 = vunpack.c.l.b16 %v996
  %v1007 = vunpack.c.l.b16 %v997
  %v1008 = vunpack.c.l.b16 %v998
  %v1009 = vunpack.c.l.b16 %v999
  %v1010 = vpack.c.b16 %v1007, %v1006
  %v1011 = vpack.c.b16 %v1009, %v1008
  %vm1014 = vcmask 261120
  %v1016 = vsel %vm1014, %v1000, 0
  %1018 = vmatpush.bf16.msra.mxu0 0
  %1019 = vmatpush.bf16.msra.mxu0 0
  %1020 = vmatpush.bf16.msra.mxu0 0
  %1021 = vmatpush.bf16.msra.mxu0 0
  %1022 = vmatpush.bf16.msra.mxu0 0
  %1023 = vmatpush.bf16.msra.mxu0 0
  %1024 = vmatpush.bf16.msra.mxu0 %v1011
  %1025 = vmatpush.bf16.msra.mxu0 %v1010
  %1026 = vmatmul.bf16.gmra.mxu0 %v1016
  %v1027 = vpop.f32.mrf.mxu0
  %v1028 = vadd.f32 %v1001, %v1027
  %v1029 = vpop.f32.mrf.mxu0
  %1030 = vdwg.mxu0
  %1031 = vst [vmem:[%s3] sm:$0xff] %v1028
  %1032 = vst [vmem:[%s3 + $0x8] sm:$0xff] %v653
  %1033 = vst [vmem:[%s3 + $0x10] sm:$0xff] %v864
  // Predicated region
  $region14: #{forward.1} parent=0 // pred_check
    _
  $region15: #{forward.1} parent=0 // pred_check_branch
    %1035 = sbr.rel (0) target = $region17
  $region16: #{forward.1} parent=0 // pred_region
    _
  $region17: #{forward.1} parent=0 // pred_fallthru
    _
  // Predicated region
  $region18: #{forward.1} parent=0 // pred_check
    _
  $region19: #{forward.1} parent=0 // pred_check_branch
    %1037 = sbr.rel (0) target = $region21
  $region20: #{forward.1} parent=0 // pred_region
    _
  $region21: #{forward.1} parent=0 // pred_fallthru
    _

</llo_original>
